<compile_context>
chip_gen: v5e
topology: v5e:2x2
jax: 0.10.0
libtpu: 0.0.40
codegen_flags: <defaults>
</compile_context>

<pallas_src>
import functools

import jax
import jax.numpy as jnp
from jax.experimental import pallas as pl
from jax.experimental.pallas import tpu as pltpu

_MIB = 1024 * 1024
_SUBLANE = 8
_LANE = 128
_VALID_ACTS = ("relu", "tanh", "sigmoid")


def _round_up(x, m):
    return ((x + m - 1) // m) * m


def _tpu_info():
    """Best-effort (vmem_capacity_bytes, num_tensorcores); safe defaults."""
    vmem_cap = 64 * _MIB   # unknown chip -> assume tightest budget (v7x-like)
    n_cores = 1            # unknown -> assume 1 TC (v5e/v6e): skip N-split
    try:
        info = pltpu.get_tpu_info()
        cap = getattr(info, "vmem_capacity_bytes", None)
        if cap:
            vmem_cap = int(cap)
        for attr in ("num_cores", "num_tensorcores", "tensorcores_per_chip",
                     "cores_per_chip"):
            v = getattr(info, attr, None)
            if isinstance(v, int) and v > 0:
                n_cores = v
                break
    except Exception:
        pass
    return vmem_cap, n_cores


def _largest_aligned_divisor(dim, cap, align):
    """Largest t <= cap with t % align == 0 and dim % t == 0; else full dim."""
    if dim <= cap:
        return dim
    t = (cap // align) * align
    while t >= align:
        if dim % t == 0:
            return t
        t -= align
    return dim


def _shrink(dim, cur, align):
    """Largest align-multiple divisor of dim strictly below cur, or cur."""
    t = cur - align
    while t >= align:
        if t % align == 0 and dim % t == 0:
            return t
        t -= align
    return cur


def _choose_tiles(Mp, Np, Kp, bx, bw, bo, vmem_limit, small_vmem, n_cores):
    """Pick (tm, tn, tk) under an accurate VMEM footprint budget."""
    budget = int(0.80 * vmem_limit)          # ~20% headroom
    cap = 1024                               # raised caps; budget loops protect v7x

    tm = Mp if Mp <= cap else _largest_aligned_divisor(Mp, cap, _SUBLANE)

    def footprint(tm_, tn_, tk_, w_bufs):
        f = 2 * tm_ * tk_ * bx               # x tiles (double-buffered)
        f += w_bufs * tk_ * tn_ * bw         # streamed weight tiles
        f += 2 * tm_ * tn_ * bo              # output tiles
        f += 2 * _SUBLANE * tn_ * 4          # bias tile (sublane-padded, f32)
        if (Kp // tk_) > 1 and bo != 4:
            f += tm_ * tn_ * 4               # f32 accumulator scratch
        return f

    # --- Prefer single-K: no k grid axis, no accumulator RMW, no k branches.
    tn = _largest_aligned_divisor(Np, cap, _LANE)
    tn_1k = tn
    while footprint(tm, tn_1k, Kp, 2) > budget:
        nt = _shrink(Np, tn_1k, _LANE)
        if nt >= tn_1k:
            break
        tn_1k = nt
    if footprint(tm, tn_1k, Kp, 2) <= budget:
        tk = Kp
        tn = tn_1k
    else:
        # --- Multi-K path.
        tk = _largest_aligned_divisor(Kp, cap, _LANE)
        w_bufs = 2 if small_vmem else 3      # Buffered(3) only on 128-MiB chips
        # Shrink priority: tn -> tm (floored at 256) -> tk -> tm (to minimum).
        plan = (("tn", _LANE), ("tm", min(tm, 256)), ("tk", _LANE),
                ("tm", _SUBLANE))
        for name, floor in plan:
            while footprint(tm, tn, tk, w_bufs) > budget:
                if name == "tn":
                    if tn <= floor:
                        break
                    nt = _shrink(Np, tn, _LANE)
                    if nt >= tn:
                        break
                    tn = nt
                elif name == "tm":
                    if tm <= floor:
                        break
                    nt = _shrink(Mp, tm, _SUBLANE)
                    if nt >= tm:
                        break
                    tm = nt
                else:
                    if tk <= floor:
                        break
                    nt = _shrink(Kp, tk, _LANE)
                    if nt >= tk:
                        break
                    tk = nt

    # --- Megacore: split N only when the chip really has >= 2 TensorCores.
    if (n_cores >= 2 and (Mp // tm) * (Np // tn) < n_cores
            and tn % (2 * _LANE) == 0):
        tn //= 2
    return tm, tn, tk


def _apply_bias_act(out, b_ref, act, isbias):
    if isbias:
        out = out + b_ref[...].astype(jnp.float32)   # (1, tn) broadcasts
    if act == "relu":
        out = jnp.maximum(out, 0.0)
    elif act == "tanh":
        out = jnp.tanh(out)
    elif act == "sigmoid":
        out = jax.nn.sigmoid(out)
    return out


def _linear_kernel_single_k(*refs, act, isbias):
    """Single K step: one fused dot + bias + act, no accumulator."""
    if isbias:
        x_ref, w_ref, b_ref, o_ref = refs
    else:
        x_ref, w_ref, o_ref = refs
        b_ref = None
    out = jnp.dot(x_ref[...], w_ref[...], preferred_element_type=jnp.float32)
    o_ref[...] = _apply_bias_act(out, b_ref, act, isbias).astype(o_ref.dtype)


def _linear_kernel_multi_k(*refs, act, isbias, acc_in_out):
    """K-reduction along grid axis 2; accumulate directly in o_ref when f32."""
    if acc_in_out:
        if isbias:
            x_ref, w_ref, b_ref, o_ref = refs
        else:
            x_ref, w_ref, o_ref = refs
            b_ref = None
        acc_ref = o_ref
    else:
        if isbias:
            x_ref, w_ref, b_ref, o_ref, acc_ref = refs
        else:
            x_ref, w_ref, o_ref, acc_ref = refs
            b_ref = None

    k = pl.program_id(2)
    contrib = jnp.dot(x_ref[...], w_ref[...], preferred_element_type=jnp.float32)

    @pl.when(k == 0)
    def _():
        acc_ref[...] = contrib.astype(acc_ref.dtype)

    @pl.when(k > 0)
    def _():
        acc_ref[...] = acc_ref[...] + contrib.astype(acc_ref.dtype)

    @pl.when(k == pl.num_programs(2) - 1)
    def _():
        out = _apply_bias_act(acc_ref[...].astype(jnp.float32), b_ref, act, isbias)
        o_ref[...] = out.astype(o_ref.dtype)


def linear_forward(x, weight, bias=None, act="relu", *,
                   compute_dtype=None, tm=None, tn=None, tk=None):
    """Pallas TPU equivalent of Linear.forward: act(x @ W (+ bias)).

    x: [..., ind], weight: [ind, outd], bias: [outd] or None,
    act in {'relu','tanh','sigmoid', None}.

    compute_dtype: optional operand dtype for the matmul (e.g. jnp.bfloat16);
    accumulation stays f32 and the output keeps x's original dtype.  For the
    weight-bandwidth-bound regime, persist the weights in compute_dtype (pass
    them already cast) -- a per-call cast would round-trip W through HBM and
    negate the bandwidth win.
    """
    if act is not None and act not in _VALID_ACTS:
        raise ValueError(f"Unknown activation {act!r}; expected one of "
                         f"{_VALID_ACTS} or None.")

    out_dtype = x.dtype
    if compute_dtype is not None:
        if x.dtype != jnp.dtype(compute_dtype):
            x = x.astype(compute_dtype)
        if weight.dtype != jnp.dtype(compute_dtype):
            weight = weight.astype(compute_dtype)

    # Flatten leading batch dims (torch.matmul semantics on [..., ind]).
    orig_lead = x.shape[:-1]
    if x.ndim == 1:
        x = x[None, :]
    elif x.ndim > 2:
        x = x.reshape(-1, x.shape[-1])

    M, K = x.shape
    K2, N = weight.shape
    if K != K2:
        raise ValueError("x feature dim must match weight.shape[0]")
    isbias = bias is not None

    # Zero-pad to hardware-friendly shapes: M to sublane, K/N to lane
    # multiples.  Keeps output stores lane-dense (unmasked vst) and lets the
    # tile picker always shrink to an aligned divisor.
    Mp = _round_up(M, _SUBLANE)
    Kp = _round_up(K, _LANE)
    Np = _round_up(N, _LANE)
    if (Mp, Kp) != (M, K):
        x = jnp.pad(x, ((0, Mp - M), (0, Kp - K)))
    if (Kp, Np) != (K, N):
        weight = jnp.pad(weight, ((0, Kp - K), (0, Np - N)))
    if isbias and Np != N:
        bias = jnp.pad(bias, (0, Np - N))

    vmem_cap, n_cores = _tpu_info()
    vmem_limit = max(32 * _MIB, min(vmem_cap // 2, 64 * _MIB))
    small_vmem = vmem_cap <= 64 * _MIB        # v7x-like

    bx = jnp.dtype(x.dtype).itemsize
    bw = jnp.dtype(weight.dtype).itemsize
    bo = jnp.dtype(out_dtype).itemsize
    atm, atn, atk = _choose_tiles(Mp, Np, Kp, bx, bw, bo, vmem_limit,
                                  small_vmem, n_cores)
    tm = tm or atm
    tn = tn or atn
    tk = tk or atk
    if Mp % tm or Np % tn or Kp % tk:
        raise ValueError(f"tiles ({tm},{tn},{tk}) must divide padded shape "
                         f"({Mp},{Np},{Kp})")

    n_k = Kp // tk
    operands = [x, weight]

    flops = 2 * Mp * Np * Kp
    transcendentals = Mp * Np if act in ("tanh", "sigmoid") else 0
    bytes_accessed = Mp * Kp * bx + Kp * Np * bw + Mp * Np * bo
    if isbias:
        bytes_accessed += Np * jnp.dtype(bias.dtype).itemsize
    cost = pl.CostEstimate(flops=flops, transcendentals=transcendentals,
                           bytes_accessed=bytes_accessed)

    if n_k == 1:
        kernel = functools.partial(_linear_kernel_single_k, act=act,
                                   isbias=isbias)
        grid = (Mp // tm, Np // tn)
        in_specs = [pl.BlockSpec((tm, tk), lambda i, j: (i, 0)),   # x tile
                    pl.BlockSpec((tk, tn), lambda i, j: (0, j))]   # W tile
        if isbias:
            in_specs.append(pl.BlockSpec((1, tn), lambda i, j: (0, j)))
            operands.append(bias.reshape(1, Np))
        out_specs = pl.BlockSpec((tm, tn), lambda i, j: (i, j))
        scratch_shapes = []
        dims = ("parallel", "parallel")
    else:
        acc_in_out = jnp.dtype(out_dtype) == jnp.dtype(jnp.float32)
        kernel = functools.partial(_linear_kernel_multi_k, act=act,
                                   isbias=isbias, acc_in_out=acc_in_out)
        grid = (Mp // tm, Np // tn, n_k)
        w_map = lambda i, j, k: (k, j)
        w_spec = pl.BlockSpec((tk, tn), w_map)
        if n_k >= 3 and not small_vmem:
            # Deeper buffering of the streamed (bandwidth-critical) weight
            # operand only on 128-MiB-VMEM chips (v5e/v6e).
            try:
                w_spec = pl.BlockSpec((tk, tn), w_map,
                                      pipeline_mode=pl.Buffered(3))
            except (TypeError, AttributeError):
                w_spec = pl.BlockSpec((tk, tn), w_map)
        in_specs = [pl.BlockSpec((tm, tk), lambda i, j, k: (i, k)), w_spec]
        if isbias:
            in_specs.append(pl.BlockSpec((1, tn), lambda i, j, k: (0, j)))
            operands.append(bias.reshape(1, Np))
        out_specs = pl.BlockSpec((tm, tn), lambda i, j, k: (i, j))
        scratch_shapes = [] if acc_in_out else [pltpu.VMEM((tm, tn), jnp.float32)]
        dims = ("parallel", "parallel", "arbitrary")

    out = pl.pallas_call(
        kernel,
        out_shape=jax.ShapeDtypeStruct((Mp, Np), out_dtype),
        grid_spec=pltpu.PrefetchScalarGridSpec(
            num_scalar_prefetch=0,
            grid=grid,
            in_specs=in_specs,
            out_specs=out_specs,
            scratch_shapes=scratch_shapes,
        ),
        compiler_params=pltpu.CompilerParams(
            dimension_semantics=dims,
            vmem_limit_bytes=vmem_limit,
        ),
        cost_estimate=cost,
    )(*operands)

    if (Mp, Np) != (M, N):
        out = out[:M, :N]
    return out.reshape(orig_lead + (N,)) if orig_lead != (M,) else out


if __name__ == "__main__":
    key = jax.random.PRNGKey(0)
    keys = jax.random.split(key, 12)

    # Test 1: module default config (ind=128, outd=128, relu, bias), M=8.
    M, ind, outd = 8, 128, 128
    x = jax.random.uniform(keys[0], (M, ind), minval=-1.0, maxval=1.0)
    w = jax.random.uniform(keys[1], (ind, outd), dtype=jnp.float32)
    b = jax.random.uniform(keys[2], (outd,), dtype=jnp.float32)
    out1 = jax.block_until_ready(linear_forward(x, w, b, act="relu"))
    ref1 = jnp.maximum(x @ w + b, 0.0)
    assert out1.shape == ref1.shape
    assert jnp.allclose(out1, ref1, atol=1e-4, rtol=1e-4)

    # Test 2: no bias, tanh, non-128-multiple outd (N padded to 128, sliced).
    xs = jax.random.uniform(keys[3], (M, ind), minval=-0.1, maxval=0.1)
    w2 = jax.random.uniform(keys[4], (ind, 96), dtype=jnp.float32)
    out2 = jax.block_until_ready(linear_forward(xs, w2, None, act="tanh"))
    ref2 = jnp.tanh(xs @ w2)
    assert out2.shape == (M, 96)
    assert jnp.allclose(out2, ref2, atol=1e-4, rtol=1e-4)

    # Test 3: sigmoid + bias, non-128-multiple ind (K padded with zeros).
    x3 = jax.random.uniform(keys[5], (M, 200), minval=-0.1, maxval=0.1)
    w3 = jax.random.uniform(keys[6], (200, outd), dtype=jnp.float32)
    out3 = jax.block_until_ready(linear_forward(x3, w3, b, act="sigmoid"))
    ref3 = jax.nn.sigmoid(x3 @ w3 + b)
    assert jnp.allclose(out3, ref3, atol=1e-4, rtol=1e-4)

    # Test 4: forced multi-K path (K tiled; accumulate in f32 output block).
    K4 = 512
    x4 = jax.random.uniform(keys[7], (M, K4), minval=-1.0, maxval=1.0)
    w4 = jax.random.uniform(keys[8], (K4, outd), dtype=jnp.float32)
    out4 = jax.block_until_ready(linear_forward(x4, w4, b, act=None, tk=128))
    ref4 = x4 @ w4 + b
    assert jnp.allclose(out4, ref4, atol=1e-3, rtol=1e-3)

    # Test 5: persisted-bf16 operands, forced multi-K with f32 scratch
    # accumulator (output dtype bf16); loose tolerance.
    x5 = x4.astype(jnp.bfloat16)
    w5 = w4.astype(jnp.bfloat16)
    out5 = jax.block_until_ready(
        linear_forward(x5, w5, b, act="relu", compute_dtype=jnp.bfloat16,
                       tk=128))
    ref5 = jnp.maximum(x5.astype(jnp.float32) @ w5.astype(jnp.float32) + b, 0.0)
    assert out5.dtype == jnp.bfloat16
    assert jnp.allclose(out5.astype(jnp.float32), ref5, atol=5e-2, rtol=5e-2)

    # Test 6: odd M (padded to the sublane granularity and sliced back).
    x6 = jax.random.uniform(keys[9], (5, ind), minval=-1.0, maxval=1.0)
    out6 = jax.block_until_ready(linear_forward(x6, w, b, act="relu"))
    ref6 = jnp.maximum(x6 @ w + b, 0.0)
    assert out6.shape == (5, outd)
    assert jnp.allclose(out6, ref6, atol=1e-4, rtol=1e-4)

    print("KERNEL_OK")
</pallas_src>

<mosaic_0001>
module attributes {stable_mosaic.version = 11 : i64} {
  func.func @_linear_kernel_single_k(%arg0: i32, %arg1: i32, %arg2: memref<8x128xf32, #tpu.memory_space<vmem>>, %arg3: memref<128x128xf32, #tpu.memory_space<vmem>>, %arg4: memref<1x128xf32, #tpu.memory_space<vmem>>, %arg5: memref<8x128xf32, #tpu.memory_space<vmem>>) attributes {dimension_semantics = [#tpu.dimension_semantics<parallel>, #tpu.dimension_semantics<parallel>], iteration_bounds = array<i64: 1, 1>, scalar_prefetch = 0 : i64, scratch_operands = 0 : i64, tpu.core_type = #tpu.core_type<tc>, window_params = [{transform_indices = @transform_0, window_bounds = array<i64: 8, 128>}, {transform_indices = @transform_1, window_bounds = array<i64: 128, 128>}, {transform_indices = @transform_2, window_bounds = array<i64: 1, 128>}, {transform_indices = @transform_3, window_bounds = array<i64: 8, 128>}]} {
    %c0 = arith.constant 0 : index
    %c0_0 = arith.constant 0 : index
    %0 = vector.load %arg2[%c0, %c0_0] : memref<8x128xf32, #tpu.memory_space<vmem>>, vector<8x128xf32>
    %c0_1 = arith.constant 0 : index
    %c0_2 = arith.constant 0 : index
    %1 = vector.load %arg3[%c0_1, %c0_2] : memref<128x128xf32, #tpu.memory_space<vmem>>, vector<128x128xf32>
    %cst = arith.constant dense<0.000000e+00> : vector<8x128xf32>
    %2 = tpu.matmul %0, %1, %cst {dimension_numbers = #tpu.dot_dimension_numbers<[1], [0], [0], [1], [0, 0, 1, 1], [], []>} : vector<8x128xf32>, vector<128x128xf32>, vector<8x128xf32> -> vector<8x128xf32>
    %c0_3 = arith.constant 0 : index
    %c0_4 = arith.constant 0 : index
    %3 = vector.load %arg4[%c0_3, %c0_4] : memref<1x128xf32, #tpu.memory_space<vmem>>, vector<1x128xf32>
    %4 = vector.broadcast %3 : vector<1x128xf32> to vector<8x128xf32>
    %5 = arith.addf %2, %4 : vector<8x128xf32>
    %cst_5 = arith.constant 0.000000e+00 : f32
    %6 = vector.broadcast %cst_5 : f32 to vector<8x128xf32>
    %7 = arith.maximumf %5, %6 : vector<8x128xf32>
    %c0_6 = arith.constant 0 : index
    %c0_7 = arith.constant 0 : index
    %8 = vector.load %arg5[%c0_6, %c0_7] : memref<8x128xf32, #tpu.memory_space<vmem>>, vector<8x128xf32>
    tpu.vector_store %arg5[%c0_6, %c0_7], %7 {strides = array<i32>} : memref<8x128xf32, #tpu.memory_space<vmem>>, vector<8x128xf32>,
    return
  }
  func.func @transform_0(%arg0: i32, %arg1: i32) -> (i32, i32) {
    %c0_i32 = arith.constant 0 : i32
    %c0_i32_0 = arith.constant 0 : i32
    return %arg0, %c0_i32 : i32, i32
  }
  func.func @transform_1(%arg0: i32, %arg1: i32) -> (i32, i32) {
    %c0_i32 = arith.constant 0 : i32
    %c0_i32_0 = arith.constant 0 : i32
    return %c0_i32, %arg1 : i32, i32
  }
  func.func @transform_2(%arg0: i32, %arg1: i32) -> (i32, i32) {
    %c0_i32 = arith.constant 0 : i32
    %c0_i32_0 = arith.constant 0 : i32
    return %c0_i32, %arg1 : i32, i32
  }
  func.func @transform_3(%arg0: i32, %arg1: i32) -> (i32, i32) {
    %c0_i32 = arith.constant 0 : i32
    return %arg0, %arg1 : i32, i32
  }
}

</mosaic_0001>

<llo_original>
// kernel: tpu_custom_call.1
$region0: #{tpu_custom_call.1}
  #allocation0 [shape = 'u32[]', space=smem, size = 0x4, offset = 0x4, fixed_abs, tag = 'smem constant byte address 0x4 - core index']
  #allocation1 [shape = 'u32[72,128]{1,0:T(1,128)}', space=vmem, size = 0x9000, scoped, tag = 'internal scratch']
  %s0 = inlined_call_operand.hbm [shape: f32[8,128], index: 0, kind: input, shape index: {}]
  %s1 = inlined_call_operand.hbm [shape: f32[128,128], index: 1, kind: input, shape index: {}]
  %s2 = inlined_call_operand.vmem [shape: f32[1,128], index: 2, kind: input, shape index: {}]
  %s3 = inlined_call_operand.hbm [shape: f32[8,128], index: 3, kind: output, shape index: {}]
  %s4 = sld [smem:[#allocation0]]
  $region30: #{tpu_custom_call.1} parent=0
    _
  %s6 = ssub.s32 1, %s4
  %s7 = scalar_select 0, %s6, %s4
  $region1: #{tpu_custom_call.1} parent=0
    #allocation2 [shape = 'u8[4096]{0}', space=vmem, size = 0x1000, scoped, tag = 'input window, operand 0, single buffered']
    #allocation3 [shape = 's32[1]{0}', space=sflag, size = 0x4, scoped, tag = 'scoped memory for tpu_custom_call.1']
    #allocation4 [shape = 's32[1]{0}', space=sflag, size = 0x4, scoped, tag = 'scoped memory for tpu_custom_call.1']
    #allocation5 [shape = 'u8[65536]{0}', space=vmem, size = 0x10000, scoped, tag = 'input window, operand 1, single buffered']
    #allocation6 [shape = 's32[1]{0}', space=sflag, size = 0x4, scoped, tag = 'scoped memory for tpu_custom_call.1']
    #allocation7 [shape = 'u8[4096]{0}', space=vmem, size = 0x1000, scoped, tag = 'output window, operand 0, single buffered']
    %8 = vsyncpa [#allocation3], 0
    %9 = vsyncpa [#allocation6], 0
    %10 = vsyncpa [#allocation4], 0
    // Predicated region
    $region2: #{tpu_custom_call.1} parent=1 // pred_check
      _
    $region3: #{tpu_custom_call.1} parent=1 // pred_check_branch
      %12 = sbr.rel (0) target = $region5
    $region4: #{tpu_custom_call.1} parent=1 // pred_region
      %14 = vsyncadd [#allocation3], 0
      %s16 = sshll.u32 %s0, 4
      %s17 = int_to_ptr.hbm [resolvable:$true] %s16
      %s18 = sshll.u32 [#allocation2], 4
      %s19 = int_to_ptr.vmem [resolvable:$true] %s18
      %21 = dma.hbm_to_vmem [thread:$0]  %s17, 128, %s19, [#allocation3]
    $region5: #{tpu_custom_call.1} parent=1 // pred_fallthru
      _
    // Predicated region
    $region6: #{tpu_custom_call.1} parent=1 // pred_check
      _
    $region7: #{tpu_custom_call.1} parent=1 // pred_check_branch
      %23 = sbr.rel (0) target = $region9
    $region8: #{tpu_custom_call.1} parent=1 // pred_region
      %25 = vsyncadd [#allocation6], 0
      %s26 = sshll.u32 %s1, 4
      %s27 = int_to_ptr.hbm [resolvable:$true] %s26
      %s28 = sshll.u32 [#allocation5], 4
      %s29 = int_to_ptr.vmem [resolvable:$true] %s28
      %34 = dma.hbm_to_vmem [thread:$0]  %s27, 2048, %s29, [#allocation6], 128, 128, 8
    $region9: #{tpu_custom_call.1} parent=1 // pred_fallthru
      _
    // Predicated region
    $region10: #{tpu_custom_call.1} parent=1 // pred_check
      _
    $region11: #{tpu_custom_call.1} parent=1 // pred_check_branch
      %36 = sbr.rel (0) target = $region13
    $region12: #{tpu_custom_call.1} parent=1 // pred_region
      _
    $region13: #{tpu_custom_call.1} parent=1 // pred_fallthru
      _
    // Predicated region
    $region14: #{tpu_custom_call.1} parent=1 // pred_check
      _
    $region15: #{tpu_custom_call.1} parent=1 // pred_check_branch
      %38 = sbr.rel (0) target = $region17
    $region16: #{tpu_custom_call.1} parent=1 // pred_region
      %40 = dma.done [#allocation3], 128
    $region17: #{tpu_custom_call.1} parent=1 // pred_fallthru
      _
    // Predicated region
    $region18: #{tpu_custom_call.1} parent=1 // pred_check
      _
    $region19: #{tpu_custom_call.1} parent=1 // pred_check_branch
      %42 = sbr.rel (0) target = $region21
    $region20: #{tpu_custom_call.1} parent=1 // pred_region
      %44 = dma.done [#allocation6], 2048
    $region21: #{tpu_custom_call.1} parent=1 // pred_fallthru
      _
    %v45 = vld [vmem:[#allocation2] sm:$0xff]
    %v46 = vld [vmem:[#allocation5] sm:$0xff]
    %v47 = vld [vmem:[#allocation5 + $0x8] sm:$0xff]
    %v48 = vld [vmem:[#allocation5 + $0x10] sm:$0xff]
    %v49 = vld [vmem:[#allocation5 + $0x18] sm:$0xff]
    %v50 = vld [vmem:[#allocation5 + $0x20] sm:$0xff]
    %v51 = vld [vmem:[#allocation5 + $0x28] sm:$0xff]
    %v52 = vld [vmem:[#allocation5 + $0x30] sm:$0xff]
    %v53 = vld [vmem:[#allocation5 + $0x38] sm:$0xff]
    %v54 = vld [vmem:[#allocation5 + $0x40] sm:$0xff]
    %v55 = vld [vmem:[#allocation5 + $0x48] sm:$0xff]
    %v56 = vld [vmem:[#allocation5 + $0x50] sm:$0xff]
    %v57 = vld [vmem:[#allocation5 + $0x58] sm:$0xff]
    %v58 = vld [vmem:[#allocation5 + $0x60] sm:$0xff]
    %v59 = vld [vmem:[#allocation5 + $0x68] sm:$0xff]
    %v60 = vld [vmem:[#allocation5 + $0x70] sm:$0xff]
    %v61 = vld [vmem:[#allocation5 + $0x78] sm:$0xff]
    %v62 = vld [vmem:[%s2] sm:$0x1]
    %v64 = vperm.slane %v62, 0
    %66 = vmatpush.msra.mxu0 %v61
    %67 = vmatpush.msra.mxu0 %v60
    %68 = vmatpush.msra.mxu0 %v59
    %69 = vmatpush.msra.mxu0 %v58
    %70 = vmatpush.msra.mxu0 %v57
    %71 = vmatpush.msra.mxu0 %v56
    %72 = vmatpush.msra.mxu0 %v55
    %73 = vmatpush.msra.mxu0 %v54
    %74 = vmatpush.msra.mxu0 %v53
    %75 = vmatpush.msra.mxu0 %v52
    %76 = vmatpush.msra.mxu0 %v51
    %77 = vmatpush.msra.mxu0 %v50
    %78 = vmatpush.msra.mxu0 %v49
    %79 = vmatpush.msra.mxu0 %v48
    %80 = vmatpush.msra.mxu0 %v47
    %81 = vmatpush.msra.mxu0 %v46
    %82 = vmatmul.f32.gmra.mxu0 %v45
    %v83 = vpop.f32.mrf.mxu0
    %v84 = vadd.f32 %v64, %v83
    %85 = vdwg.mxu0
    %v86 = vmax.f32 %v84, 0.0
    %87 = vst [vmem:[#allocation7] sm:$0xff] %v86
    // Predicated region
    $region22: #{tpu_custom_call.1} parent=1 // pred_check
      _
    $region23: #{tpu_custom_call.1} parent=1 // pred_check_branch
      %89 = sbr.rel (0) target = $region25
    $region24: #{tpu_custom_call.1} parent=1 // pred_region
      %91 = vsyncadd [#allocation4], 0
      %s93 = sshll.u32 [#allocation7], 4
      %s94 = int_to_ptr.vmem [resolvable:$true] %s93
      %s95 = sshll.u32 %s3, 4
      %s96 = int_to_ptr.hbm [resolvable:$true] %s95
      %98 = dma.vmem_to_hbm [thread:$0]  %s94, 128, %s96, [#allocation4]
    $region25: #{tpu_custom_call.1} parent=1 // pred_fallthru
      _
    // Predicated region
    $region26: #{tpu_custom_call.1} parent=1 // pred_check
      _
    $region27: #{tpu_custom_call.1} parent=1 // pred_check_branch
      %100 = sbr.rel (0) target = $region29
    $region28: #{tpu_custom_call.1} parent=1 // pred_region
      %102 = dma.done [#allocation4], 128
    $region29: #{tpu_custom_call.1} parent=1 // pred_fallthru
      _
    %103 = vsyncpa [#allocation3], 1
    %104 = vsyncpa [#allocation6], 1
    %105 = vsyncpa [#allocation4], 1

</llo_original>
